<compile_context>
chip_gen: v7x
topology: tpu7x:2x2x1
jax: 0.10.0
libtpu: 0.0.40
codegen_flags: <defaults>
</compile_context>

<pallas_src>
import functools

import jax
import jax.numpy as jnp
from jax.experimental import pallas as pl
from jax.experimental.pallas import tpu as pltpu


# ----------------------------------------------------------------------------
# Pallas kernel: similarity features + concat-as-split-matmul + dFFN, fused.
# ----------------------------------------------------------------------------
def _paragraph_fused_kernel(x_ref, qsum_ref, wbig_ref, bg_ref, b1_ref,
                            w1s_ref, w2_ref, b2_ref, out_ref, *, emb, sim):
    # x_ref   : (TP, emb + aux_pad) bf16   [word_emb | pos | ner | match | 0pad]
    # qsum_ref: (1, emb) f32               sum_j (q_j / ||q_j||)
    # wbig_ref: (emb + aux_pad, sim + H) bf16
    #             rows [0:emb]          -> [ g_W | dFFN.W1(emb rows) ]
    #             rows [emb:emb+d_aux]  -> [  0  | dFFN.W1(aux rows) ]
    #             rows [emb+d_aux: ]    -> zeros (lane padding)
    # bg_ref  : (1, sim) f32   g bias
    # b1_ref  : (1, H)   f32   dFFN layer-1 bias
    # w1s_ref : (sim, H) bf16  dFFN layer-1 rows for the similarity features
    # w2_ref  : (H, Dout) bf16 dFFN layer-2 weight
    # b2_ref  : (1, Dout) f32  dFFN layer-2 bias
    x = x_ref[...]                                     # (TP, emb+aux_pad) bf16
    p_f = x[:, :emb].astype(jnp.float32)               # (TP, emb) f32
    qsum = qsum_ref[...]                               # (1, emb) f32

    # sum_j cos(p_i, q_j) == (p_i . qsum) / ||p_i||    (f32; EUP rsqrt)
    inv_norm = jax.lax.rsqrt(jnp.sum(p_f * p_f, axis=-1, keepdims=True) + 1e-12)
    word_sim = jnp.sum(p_f * qsum, axis=-1, keepdims=True) * inv_norm  # (TP, 1)

    # One K=256, N=256 MXU pass covering g AND the emb+aux part of dFFN.W1.
    big = jnp.dot(x, wbig_ref[...], preferred_element_type=jnp.float32)  # (TP, sim+H)
    g = jnp.maximum(big[:, :sim] + bg_ref[...], 0.0)                     # (TP, sim) f32

    # (relu(g) * word_sim) @ W1s  ==  word_sim * (relu(g) @ W1s):
    # do the matmul on un-scaled bf16 activations, scale in the f32 epilogue.
    h_sim = jnp.dot(g.astype(jnp.bfloat16), w1s_ref[...],
                    preferred_element_type=jnp.float32)                  # (TP, H)
    h = jnp.maximum(big[:, sim:] + word_sim * h_sim + b1_ref[...], 0.0)  # (TP, H)

    # dFFN layer 2.
    y = jnp.dot(h.astype(jnp.bfloat16), w2_ref[...],
                preferred_element_type=jnp.float32) + b2_ref[...]
    out_ref[...] = jnp.maximum(y, 0.0)


def paragraph_encode(x, q_sum, w_big, bg, b1, w1s, w2, b2, *, emb, sim, tp=256):
    # x: (P, emb + aux_pad) bf16 — the only operand that streams per grid step.
    P, d_x = x.shape
    d_out = w2.shape[1]
    # Single step for small P (v5e/v6e: no reason to split 128 rows); 256-row
    # tiles for large P keep an even, >=2-step "parallel" grid for v7x's 2 TCs.
    tp = min(tp, P)
    assert P % tp == 0, "demo keeps P a multiple of the row tile"
    kernel = functools.partial(_paragraph_fused_kernel, emb=emb, sim=sim)
    return pl.pallas_call(
        kernel,
        out_shape=jax.ShapeDtypeStruct((P, d_out), jnp.float32),
        grid=(P // tp,),
        in_specs=[
            pl.BlockSpec((tp, d_x), lambda i: (i, 0)),        # streamed rows
            pl.BlockSpec(q_sum.shape, lambda i: (0, 0)),      # grid-invariant
            pl.BlockSpec(w_big.shape, lambda i: (0, 0)),
            pl.BlockSpec(bg.shape, lambda i: (0, 0)),
            pl.BlockSpec(b1.shape, lambda i: (0, 0)),
            pl.BlockSpec(w1s.shape, lambda i: (0, 0)),
            pl.BlockSpec(w2.shape, lambda i: (0, 0)),
            pl.BlockSpec(b2.shape, lambda i: (0, 0)),
        ],
        out_specs=pl.BlockSpec((tp, d_out), lambda i: (i, 0)),
        compiler_params=pltpu.CompilerParams(
            dimension_semantics=("parallel",)),
    )(x, q_sum, w_big, bg, b1, w1s, w2, b2)


# ----------------------------------------------------------------------------
# LexiconEncoder (JAX wrapper)
# ----------------------------------------------------------------------------
class LexiconEncoderPallas:
    def __init__(self, key, cfg):
        self.cfg = cfg
        ks = jax.random.split(key, 8)

        def lin(k, din, dout):
            kw, kb = jax.random.split(k)
            scale = 1.0 / jnp.sqrt(din)
            w = jax.random.uniform(kw, (din, dout), jnp.float32, -scale, scale)
            b = jax.random.uniform(kb, (1, dout), jnp.float32, -scale, scale)
            return w, b

        E = cfg["word_emb"]
        S = cfg["similarity_linear_nn_output_size"]
        H = cfg["paragraph_ffn_hidden_size"]
        d_in = cfg["paragraph_ffn_input_size"]
        d_aux = d_in - E - S                      # pos + ner + exact_match dims
        aux_pad = ((d_aux + 127) // 128) * 128    # lane-dense aux block
        self.emb_dim = E
        self.sim_dim = S
        self.d_aux = d_aux
        self.aux_pad = aux_pad

        # embedding tables (deterministic synthetic init), f32
        self.word_table = jax.random.normal(
            ks[0], (cfg["word_vocab"], E), jnp.float32)
        self.pos_table = jax.random.normal(
            ks[1], (cfg["pos_embeddings_size"], cfg["pos_embeddings_output_size"]),
            jnp.float32)
        self.ner_table = jax.random.normal(
            ks[2], (cfg["ner_embeddings_size"], cfg["ner_embeddings_output_size"]),
            jnp.float32)

        # g : similarity linear
        g_w, self.g_b = lin(ks[3], cfg["similarity_linear_nn_input_size"], S)

        # qFFN (tiny: computed by XLA in forward(); keep f32)
        self.q_w1, self.q_b1 = lin(ks[4], cfg["question_ffn_input_size"],
                                   cfg["question_ffn_hidden_size"])
        self.q_w2, self.q_b2 = lin(ks[5], cfg["question_ffn_hidden_size"],
                                   cfg["question_ffn_second_hidden_size"])

        # dFFN -- layer-1 weight split row-wise and pre-fused with g's weight
        # into a single (E + aux_pad, S + H) bf16 operand for one MXU pass.
        d_w1, self.d_b1 = lin(ks[6], d_in, H)
        w_big = jnp.zeros((E + aux_pad, S + H), jnp.float32)
        w_big = w_big.at[:E, :S].set(g_w)                         # g columns
        w_big = w_big.at[:E, S:].set(d_w1[:E])                    # emb rows of W1
        w_big = w_big.at[E:E + d_aux, S:].set(d_w1[E:E + d_aux])  # aux rows of W1
        self.w_big = w_big.astype(jnp.bfloat16)
        self.d_w1_sim = d_w1[E + d_aux:].astype(jnp.bfloat16)     # sim rows of W1
        d_w2, self.d_b2 = lin(ks[7], H, cfg["paragraph_ffn_second_hidden_size"])
        self.d_w2 = d_w2.astype(jnp.bfloat16)
        self.output_size = cfg["paragraph_ffn_second_hidden_size"]

    def forward(self, paragraph, question):
        # --- embedding lookups (gather glue, plain JAX) ---
        paragraph_emb = jnp.take(self.word_table, paragraph["context"], axis=0)  # (P, E) f32
        question_emb = jnp.take(self.word_table, question["question"], axis=0)   # (Q, E) f32
        pos_emb = jnp.take(self.pos_table, paragraph["context_pos"], axis=0)     # (P, Dpos)
        ner_emb = jnp.take(self.ner_table, paragraph["context_ner"], axis=0)     # (P, Dner)
        paragraph_match = question["exact_match"].astype(jnp.float32)            # (P, M)

        # Lane-dense, bf16 streamed operand: [word_emb | pos | ner | match | 0pad]
        aux = jnp.concatenate([pos_emb, ner_emb, paragraph_match], axis=1)        # (P, d_aux)
        aux = jnp.pad(aux, ((0, 0), (0, self.aux_pad - self.d_aux)))              # (P, aux_pad)
        x = jnp.concatenate([paragraph_emb, aux], axis=1).astype(jnp.bfloat16)    # (P, E+aux_pad)

        # sum of L2-normalized question embeddings: the P x Q cosine-similarity
        # matrix summed over Q collapses to a dot against this (1, E) row.
        q_n = question_emb * jax.lax.rsqrt(
            jnp.sum(question_emb * question_emb, axis=-1, keepdims=True) + 1e-12)
        q_sum = jnp.sum(q_n, axis=0, keepdims=True)                               # (1, E) f32

        # --- fused hot path: similarity + concat-as-split-matmul + dFFN ---
        paragraph_out = paragraph_encode(
            x, q_sum, self.w_big, self.g_b, self.d_b1,
            self.d_w1_sim, self.d_w2, self.d_b2,
            emb=self.emb_dim, sim=self.sim_dim)                                   # (P, Dout) f32

        # --- qFFN: Q=16 rows -> MXU <7% occupied; a separate pallas_call's
        # launch cost dominates, so leave these two tiny dots to XLA. ---
        q_h = jnp.maximum(question_emb @ self.q_w1 + self.q_b1, 0.0)
        question_vector = jnp.maximum(q_h @ self.q_w2 + self.q_b2, 0.0)           # (Q, Qout)

        P = paragraph_emb.shape[0]
        Q = question_emb.shape[0]
        return (paragraph_out.reshape(1, P, -1),
                question_vector.reshape(1, Q, -1),
                paragraph_emb, question_emb)


# ----------------------------------------------------------------------------
# main
# ----------------------------------------------------------------------------
if __name__ == "__main__":
    # 128-aligned feature dims -> lane-dense MXU tiles and unmasked stores
    P_LEN, Q_LEN = 128, 16
    WORD_EMB = 128
    POS_OUT, NER_OUT, MATCH_DIM = 16, 8, 8
    SIM_OUT = 128
    D_AUX = POS_OUT + NER_OUT + MATCH_DIM                  # 32
    D_TOTAL = WORD_EMB + D_AUX + SIM_OUT                   # 288
    Q_HID, Q_OUT = 128, 128
    D_HID, D_OUT = 128, 128

    cfg = {
        "word_vocab": 50,
        "word_emb": WORD_EMB,
        "pos_embeddings_size": 20,
        "pos_embeddings_output_size": POS_OUT,
        "ner_embeddings_size": 10,
        "ner_embeddings_output_size": NER_OUT,
        "similarity_linear_nn_input_size": WORD_EMB,
        "similarity_linear_nn_output_size": SIM_OUT,
        "question_ffn_input_size": WORD_EMB,
        "question_ffn_hidden_size": Q_HID,
        "question_ffn_second_hidden_size": Q_OUT,
        "paragraph_ffn_input_size": D_TOTAL,
        "paragraph_ffn_hidden_size": D_HID,
        "paragraph_ffn_second_hidden_size": D_OUT,
    }

    key = jax.random.PRNGKey(0)
    k_model, k_p, k_q, k_pos, k_ner, k_match = jax.random.split(key, 6)

    encoder = LexiconEncoderPallas(k_model, cfg)

    paragraph = {
        "context": jax.random.randint(k_p, (P_LEN,), 0, cfg["word_vocab"]),
        "context_pos": jax.random.randint(k_pos, (P_LEN,), 0, cfg["pos_embeddings_size"]),
        "context_ner": jax.random.randint(k_ner, (P_LEN,), 0, cfg["ner_embeddings_size"]),
    }
    question = {
        "question": jax.random.randint(k_q, (Q_LEN,), 0, cfg["word_vocab"]),
        "exact_match": jax.random.bernoulli(k_match, 0.3, (P_LEN, MATCH_DIM)),
    }

    p_vec, q_vec, p_emb, q_emb = encoder.forward(paragraph, question)
    jax.block_until_ready((p_vec, q_vec, p_emb, q_emb))

    assert p_vec.shape == (1, P_LEN, D_OUT)
    assert q_vec.shape == (1, Q_LEN, Q_OUT)
    assert p_emb.shape == (P_LEN, WORD_EMB)
    assert q_emb.shape == (Q_LEN, WORD_EMB)
    assert bool(jnp.all(jnp.isfinite(p_vec))) and bool(jnp.all(jnp.isfinite(q_vec)))

    print("KERNEL_OK")
</pallas_src>

<mosaic_0001>
module attributes {stable_mosaic.version = 11 : i64} {
  func.func @_paragraph_fused_kernel(%arg0: i32, %arg1: memref<128x256xbf16, #tpu.memory_space<vmem>>, %arg2: memref<1x128xf32, #tpu.memory_space<vmem>>, %arg3: memref<256x256xbf16, #tpu.memory_space<vmem>>, %arg4: memref<1x128xf32, #tpu.memory_space<vmem>>, %arg5: memref<1x128xf32, #tpu.memory_space<vmem>>, %arg6: memref<128x128xbf16, #tpu.memory_space<vmem>>, %arg7: memref<128x128xbf16, #tpu.memory_space<vmem>>, %arg8: memref<1x128xf32, #tpu.memory_space<vmem>>, %arg9: memref<128x128xf32, #tpu.memory_space<vmem>>) attributes {dimension_semantics = [#tpu.dimension_semantics<parallel>], iteration_bounds = array<i64: 1>, scalar_prefetch = 0 : i64, scratch_operands = 0 : i64, tpu.core_type = #tpu.core_type<tc>, window_params = [{transform_indices = @transform_0, window_bounds = array<i64: 128, 256>}, {pipeline_mode = #tpu.pipeline_mode<synchronous>, transform_indices = @transform_1, window_bounds = array<i64: 1, 128>}, {pipeline_mode = #tpu.pipeline_mode<synchronous>, transform_indices = @transform_2, window_bounds = array<i64: 256, 256>}, {pipeline_mode = #tpu.pipeline_mode<synchronous>, transform_indices = @transform_3, window_bounds = array<i64: 1, 128>}, {pipeline_mode = #tpu.pipeline_mode<synchronous>, transform_indices = @transform_4, window_bounds = array<i64: 1, 128>}, {pipeline_mode = #tpu.pipeline_mode<synchronous>, transform_indices = @transform_5, window_bounds = array<i64: 128, 128>}, {pipeline_mode = #tpu.pipeline_mode<synchronous>, transform_indices = @transform_6, window_bounds = array<i64: 128, 128>}, {pipeline_mode = #tpu.pipeline_mode<synchronous>, transform_indices = @transform_7, window_bounds = array<i64: 1, 128>}, {transform_indices = @transform_8, window_bounds = array<i64: 128, 128>}]} {
    %c0 = arith.constant 0 : index
    %c0_0 = arith.constant 0 : index
    %0 = vector.load %arg1[%c0, %c0_0] : memref<128x256xbf16, #tpu.memory_space<vmem>>, vector<128x256xbf16>
    %1 = vector.extract_strided_slice %0 {offsets = [0, 0], sizes = [128, 128], strides = [1, 1]} : vector<128x256xbf16> to vector<128x128xbf16>
    %2 = arith.extf %1 : vector<128x128xbf16> to vector<128x128xf32>
    %c0_1 = arith.constant 0 : index
    %c0_2 = arith.constant 0 : index
    %3 = vector.load %arg2[%c0_1, %c0_2] : memref<1x128xf32, #tpu.memory_space<vmem>>, vector<1x128xf32>
    %4 = arith.mulf %2, %2 : vector<128x128xf32>
    %cst = arith.constant dense<0.000000e+00> : vector<128xf32>
    %5 = vector.multi_reduction <add>, %4, %cst [1] : vector<128x128xf32> to vector<128xf32>
    %6 = vector.shape_cast %5 : vector<128xf32> to vector<128x1xf32>
    %cst_3 = arith.constant 9.99999996E-13 : f32
    %7 = vector.broadcast %cst_3 : f32 to vector<128x1xf32>
    %8 = arith.addf %6, %7 : vector<128x1xf32>
    %9 = math.rsqrt %8 : vector<128x1xf32>
    %10 = vector.broadcast %3 : vector<1x128xf32> to vector<128x128xf32>
    %11 = arith.mulf %2, %10 : vector<128x128xf32>
    %cst_4 = arith.constant dense<0.000000e+00> : vector<128xf32>
    %12 = vector.multi_reduction <add>, %11, %cst_4 [1] : vector<128x128xf32> to vector<128xf32>
    %13 = vector.shape_cast %12 : vector<128xf32> to vector<128x1xf32>
    %14 = arith.mulf %13, %9 : vector<128x1xf32>
    %c0_5 = arith.constant 0 : index
    %c0_6 = arith.constant 0 : index
    %15 = vector.load %arg3[%c0_5, %c0_6] : memref<256x256xbf16, #tpu.memory_space<vmem>>, vector<256x256xbf16>
    %cst_7 = arith.constant dense<0.000000e+00> : vector<128x256xf32>
    %16 = tpu.matmul %0, %15, %cst_7 {dimension_numbers = #tpu.dot_dimension_numbers<[1], [0], [0], [1], [0, 0, 1, 1], [], []>} : vector<128x256xbf16>, vector<256x256xbf16>, vector<128x256xf32> -> vector<128x256xf32>
    %17 = vector.extract_strided_slice %16 {offsets = [0, 0], sizes = [128, 128], strides = [1, 1]} : vector<128x256xf32> to vector<128x128xf32>
    %c0_8 = arith.constant 0 : index
    %c0_9 = arith.constant 0 : index
    %18 = vector.load %arg4[%c0_8, %c0_9] : memref<1x128xf32, #tpu.memory_space<vmem>>, vector<1x128xf32>
    %19 = vector.broadcast %18 : vector<1x128xf32> to vector<128x128xf32>
    %20 = arith.addf %17, %19 : vector<128x128xf32>
    %cst_10 = arith.constant 0.000000e+00 : f32
    %21 = vector.broadcast %cst_10 : f32 to vector<128x128xf32>
    %22 = arith.maximumf %20, %21 : vector<128x128xf32>
    %23 = arith.truncf %22 : vector<128x128xf32> to vector<128x128xbf16>
    %c0_11 = arith.constant 0 : index
    %c0_12 = arith.constant 0 : index
    %24 = vector.load %arg6[%c0_11, %c0_12] : memref<128x128xbf16, #tpu.memory_space<vmem>>, vector<128x128xbf16>
    %cst_13 = arith.constant dense<0.000000e+00> : vector<128x128xf32>
    %25 = tpu.matmul %23, %24, %cst_13 {dimension_numbers = #tpu.dot_dimension_numbers<[1], [0], [0], [1], [0, 0, 1, 1], [], []>} : vector<128x128xbf16>, vector<128x128xbf16>, vector<128x128xf32> -> vector<128x128xf32>
    %26 = vector.extract_strided_slice %16 {offsets = [0, 128], sizes = [128, 128], strides = [1, 1]} : vector<128x256xf32> to vector<128x128xf32>
    %27 = vector.broadcast %14 : vector<128x1xf32> to vector<128x128xf32>
    %28 = arith.mulf %27, %25 : vector<128x128xf32>
    %29 = arith.addf %26, %28 : vector<128x128xf32>
    %c0_14 = arith.constant 0 : index
    %c0_15 = arith.constant 0 : index
    %30 = vector.load %arg5[%c0_14, %c0_15] : memref<1x128xf32, #tpu.memory_space<vmem>>, vector<1x128xf32>
    %31 = vector.broadcast %30 : vector<1x128xf32> to vector<128x128xf32>
    %32 = arith.addf %29, %31 : vector<128x128xf32>
    %cst_16 = arith.constant 0.000000e+00 : f32
    %33 = vector.broadcast %cst_16 : f32 to vector<128x128xf32>
    %34 = arith.maximumf %32, %33 : vector<128x128xf32>
    %35 = arith.truncf %34 : vector<128x128xf32> to vector<128x128xbf16>
    %c0_17 = arith.constant 0 : index
    %c0_18 = arith.constant 0 : index
    %36 = vector.load %arg7[%c0_17, %c0_18] : memref<128x128xbf16, #tpu.memory_space<vmem>>, vector<128x128xbf16>
    %cst_19 = arith.constant dense<0.000000e+00> : vector<128x128xf32>
    %37 = tpu.matmul %35, %36, %cst_19 {dimension_numbers = #tpu.dot_dimension_numbers<[1], [0], [0], [1], [0, 0, 1, 1], [], []>} : vector<128x128xbf16>, vector<128x128xbf16>, vector<128x128xf32> -> vector<128x128xf32>
    %c0_20 = arith.constant 0 : index
    %c0_21 = arith.constant 0 : index
    %38 = vector.load %arg8[%c0_20, %c0_21] : memref<1x128xf32, #tpu.memory_space<vmem>>, vector<1x128xf32>
    %39 = vector.broadcast %38 : vector<1x128xf32> to vector<128x128xf32>
    %40 = arith.addf %37, %39 : vector<128x128xf32>
    %cst_22 = arith.constant 0.000000e+00 : f32
    %41 = vector.broadcast %cst_22 : f32 to vector<128x128xf32>
    %42 = arith.maximumf %40, %41 : vector<128x128xf32>
    %c0_23 = arith.constant 0 : index
    %c0_24 = arith.constant 0 : index
    %43 = vector.load %arg9[%c0_23, %c0_24] : memref<128x128xf32, #tpu.memory_space<vmem>>, vector<128x128xf32>
    tpu.vector_store %arg9[%c0_23, %c0_24], %42 {strides = array<i32>} : memref<128x128xf32, #tpu.memory_space<vmem>>, vector<128x128xf32>,
    return
  }
  func.func @transform_0(%arg0: i32) -> (i32, i32) {
    %c0_i32 = arith.constant 0 : i32
    %c0_i32_0 = arith.constant 0 : i32
    return %arg0, %c0_i32 : i32, i32
  }
  func.func @transform_1(%arg0: i32) -> (i32, i32) {
    %c0_i32 = arith.constant 0 : i32
    %c0_i32_0 = arith.constant 0 : i32
    %c0_i32_1 = arith.constant 0 : i32
    return %c0_i32, %c0_i32_0 : i32, i32
  }
  func.func @transform_2(%arg0: i32) -> (i32, i32) {
    %c0_i32 = arith.constant 0 : i32
    %c0_i32_0 = arith.constant 0 : i32
    %c0_i32_1 = arith.constant 0 : i32
    return %c0_i32, %c0_i32_0 : i32, i32
  }
  func.func @transform_3(%arg0: i32) -> (i32, i32) {
    %c0_i32 = arith.constant 0 : i32
    %c0_i32_0 = arith.constant 0 : i32
    %c0_i32_1 = arith.constant 0 : i32
    return %c0_i32, %c0_i32_0 : i32, i32
  }
  func.func @transform_4(%arg0: i32) -> (i32, i32) {
    %c0_i32 = arith.constant 0 : i32
    %c0_i32_0 = arith.constant 0 : i32
    %c0_i32_1 = arith.constant 0 : i32
    return %c0_i32, %c0_i32_0 : i32, i32
  }
  func.func @transform_5(%arg0: i32) -> (i32, i32) {
    %c0_i32 = arith.constant 0 : i32
    %c0_i32_0 = arith.constant 0 : i32
    %c0_i32_1 = arith.constant 0 : i32
    return %c0_i32, %c0_i32_0 : i32, i32
  }
  func.func @transform_6(%arg0: i32) -> (i32, i32) {
    %c0_i32 = arith.constant 0 : i32
    %c0_i32_0 = arith.constant 0 : i32
    %c0_i32_1 = arith.constant 0 : i32
    return %c0_i32, %c0_i32_0 : i32, i32
  }
  func.func @transform_7(%arg0: i32) -> (i32, i32) {
    %c0_i32 = arith.constant 0 : i32
    %c0_i32_0 = arith.constant 0 : i32
    %c0_i32_1 = arith.constant 0 : i32
    return %c0_i32, %c0_i32_0 : i32, i32
  }
  func.func @transform_8(%arg0: i32) -> (i32, i32) {
    %c0_i32 = arith.constant 0 : i32
    %c0_i32_0 = arith.constant 0 : i32
    return %arg0, %c0_i32 : i32, i32
  }
}

</mosaic_0001>

<llo_original>
// kernel: tpu_custom_call.1
$region0: #{tpu_custom_call.1}
  #allocation0 [shape = 'u32[]', space=smem, size = 0x4, offset = 0x4, fixed_abs, tag = 'smem constant byte address 0x4 - core index']
  #allocation1 [shape = 'u32[144,128]{1,0:T(1,128)}', space=vmem, size = 0x12000, scoped, tag = 'internal scratch']
  %s0 = inlined_call_operand.hbm [shape: bf16[128,256], index: 0, kind: input, shape index: {}]
  %s1 = inlined_call_operand.vmem [shape: f32[1,128], index: 1, kind: input, shape index: {}]
  %s2 = inlined_call_operand.hbm [shape: bf16[256,256], index: 2, kind: input, shape index: {}]
  %s3 = inlined_call_operand.vmem [shape: f32[1,128], index: 3, kind: input, shape index: {}]
  %s4 = inlined_call_operand.vmem [shape: f32[1,128], index: 4, kind: input, shape index: {}]
  %s5 = inlined_call_operand.hbm [shape: bf16[128,128], index: 5, kind: input, shape index: {}]
  %s6 = inlined_call_operand.hbm [shape: bf16[128,128], index: 6, kind: input, shape index: {}]
  %s7 = inlined_call_operand.vmem [shape: f32[1,128], index: 7, kind: input, shape index: {}]
  %s8 = inlined_call_operand.hbm [shape: f32[128,128], index: 8, kind: output, shape index: {}]
  %s9 = sld [smem:[#allocation0]]
  $region58: #{tpu_custom_call.1} parent=0
    _
  %s11 = ssub.s32 1, %s9
  %s12 = scalar_select 0, %s11, %s9
  $region1: #{tpu_custom_call.1} parent=0
    #allocation2 [shape = 'u8[65536]{0}', space=vmem, size = 0x10000, scoped, tag = 'input window, operand 0, single buffered']
    #allocation3 [shape = 's32[1]{0}', space=sflag, size = 0x4, scoped, tag = 'scoped memory for tpu_custom_call.1']
    #allocation4 [shape = 's32[1]{0}', space=sflag, size = 0x4, scoped, tag = 'scoped memory for tpu_custom_call.1']
    #allocation5 [shape = 'u8[131072]{0}', space=vmem, size = 0x20000, scoped, tag = 'input window, operand 2, single buffered']
    #allocation6 [shape = 's32[1]{0}', space=sflag, size = 0x4, scoped, tag = 'scoped memory for tpu_custom_call.1']
    #allocation7 [shape = 'u8[32768]{0}', space=vmem, size = 0x8000, scoped, tag = 'input window, operand 5, single buffered']
    #allocation8 [shape = 'u8[32768]{0}', space=vmem, size = 0x8000, scoped, tag = 'input window, operand 6, single buffered']
    #allocation9 [shape = 's32[1]{0}', space=sflag, size = 0x4, scoped, tag = 'scoped memory for tpu_custom_call.1']
    #allocation10 [shape = 'u8[65536]{0}', space=vmem, size = 0x10000, scoped, tag = 'output window, operand 0, single buffered']
    %13 = vsyncpa [#allocation3], 0
    %14 = vsyncpa [#allocation6], 0
    %15 = vsyncpa [#allocation9], 0
    %16 = vsyncpa [#allocation4], 0
    // Predicated region
    $region2: #{tpu_custom_call.1} parent=1 // pred_check
      _
    $region3: #{tpu_custom_call.1} parent=1 // pred_check_branch
      %18 = sbr.rel (0) target = $region5
    $region4: #{tpu_custom_call.1} parent=1 // pred_region
      %s20 = ssub.s32 2048, 2048
      %21 = vsyncadd [#allocation3], %s20
      %s22 = sshll.u32 [#allocation2], 4
      %s23 = int_to_ptr.vmem [resolvable:$true] %s22
      %28 = dma.hbm_to_vmem [thread:$0]  %s0, 2048, %s23, [#allocation3], 128, 128, 8
    $region5: #{tpu_custom_call.1} parent=1 // pred_fallthru
      _
    // Predicated region
    $region6: #{tpu_custom_call.1} parent=1 // pred_check
      _
    $region7: #{tpu_custom_call.1} parent=1 // pred_check_branch
      %30 = sbr.rel (0) target = $region9
    $region8: #{tpu_custom_call.1} parent=1 // pred_region
      _
    $region9: #{tpu_custom_call.1} parent=1 // pred_fallthru
      _
    // Predicated region
    $region10: #{tpu_custom_call.1} parent=1 // pred_check
      _
    $region11: #{tpu_custom_call.1} parent=1 // pred_check_branch
      %32 = sbr.rel (0) target = $region13
    $region12: #{tpu_custom_call.1} parent=1 // pred_region
      %s34 = ssub.s32 4096, 4096
      %35 = vsyncadd [#allocation6], %s34
      %s36 = sshll.u32 [#allocation5], 4
      %s37 = int_to_ptr.vmem [resolvable:$true] %s36
      %42 = dma.hbm_to_vmem [thread:$0]  %s2, 4096, %s37, [#allocation6], 128, 128, 8
    $region13: #{tpu_custom_call.1} parent=1 // pred_fallthru
      _
    // Predicated region
    $region14: #{tpu_custom_call.1} parent=1 // pred_check
      _
    $region15: #{tpu_custom_call.1} parent=1 // pred_check_branch
      %44 = sbr.rel (0) target = $region17
    $region16: #{tpu_custom_call.1} parent=1 // pred_region
      _
    $region17: #{tpu_custom_call.1} parent=1 // pred_fallthru
      _
    // Predicated region
    $region18: #{tpu_custom_call.1} parent=1 // pred_check
      _
    $region19: #{tpu_custom_call.1} parent=1 // pred_check_branch
      %46 = sbr.rel (0) target = $region21
    $region20: #{tpu_custom_call.1} parent=1 // pred_region
      _
    $region21: #{tpu_custom_call.1} parent=1 // pred_fallthru
      _
    // Predicated region
    $region22: #{tpu_custom_call.1} parent=1 // pred_check
      _
    $region23: #{tpu_custom_call.1} parent=1 // pred_check_branch
      %48 = sbr.rel (0) target = $region25
    $region24: #{tpu_custom_call.1} parent=1 // pred_region
      %s50 = ssub.s32 1024, 1024
      %51 = vsyncadd [#allocation6], %s50
      %s52 = sshll.u32 [#allocation7], 4
      %s53 = int_to_ptr.vmem [resolvable:$true] %s52
      %58 = dma.hbm_to_vmem [thread:$0]  %s5, 1024, %s53, [#allocation6], 64, 64, 4
    $region25: #{tpu_custom_call.1} parent=1 // pred_fallthru
      _
    // Predicated region
    $region26: #{tpu_custom_call.1} parent=1 // pred_check
      _
    $region27: #{tpu_custom_call.1} parent=1 // pred_check_branch
      %60 = sbr.rel (0) target = $region29
    $region28: #{tpu_custom_call.1} parent=1 // pred_region
      %s62 = ssub.s32 1024, 1024
      %63 = vsyncadd [#allocation9], %s62
      %s64 = sshll.u32 [#allocation8], 4
      %s65 = int_to_ptr.vmem [resolvable:$true] %s64
      %70 = dma.hbm_to_vmem [thread:$0]  %s6, 1024, %s65, [#allocation9], 64, 64, 4
    $region29: #{tpu_custom_call.1} parent=1 // pred_fallthru
      _
    // Predicated region
    $region30: #{tpu_custom_call.1} parent=1 // pred_check
      _
    $region31: #{tpu_custom_call.1} parent=1 // pred_check_branch
      %72 = sbr.rel (0) target = $region33
    $region32: #{tpu_custom_call.1} parent=1 // pred_region
      _
    $region33: #{tpu_custom_call.1} parent=1 // pred_fallthru
      _
    // Predicated region
    $region34: #{tpu_custom_call.1} parent=1 // pred_check
      _
    $region35: #{tpu_custom_call.1} parent=1 // pred_check_branch
      %74 = sbr.rel (0) target = $region37
    $region36: #{tpu_custom_call.1} parent=1 // pred_region
      %75 = dma.done [#allocation3], 2048
    $region37: #{tpu_custom_call.1} parent=1 // pred_fallthru
      _
    // Predicated region
    $region38: #{tpu_custom_call.1} parent=1 // pred_check
      _
    $region39: #{tpu_custom_call.1} parent=1 // pred_check_branch
      %77 = sbr.rel (0) target = $region41
    $region40: #{tpu_custom_call.1} parent=1 // pred_region
      %78 = dma.done [#allocation6], 4096
    $region41: #{tpu_custom_call.1} parent=1 // pred_fallthru
      _
    // Predicated region
    $region42: #{tpu_custom_call.1} parent=1 // pred_check
      _
    $region43: #{tpu_custom_call.1} parent=1 // pred_check_branch
      %80 = sbr.rel (0) target = $region45
    $region44: #{tpu_custom_call.1} parent=1 // pred_region
      %81 = dma.done [#allocation6], 1024
    $region45: #{tpu_custom_call.1} parent=1 // pred_fallthru
      _
    // Predicated region
    $region46: #{tpu_custom_call.1} parent=1 // pred_check
      _
    $region47: #{tpu_custom_call.1} parent=1 // pred_check_branch
      %83 = sbr.rel (0) target = $region49
    $region48: #{tpu_custom_call.1} parent=1 // pred_region
      %84 = dma.done [#allocation9], 1024
    $region49: #{tpu_custom_call.1} parent=1 // pred_fallthru
      _
    %v86 = vld [vmem:[#allocation2] sm:$0xff]
    %v87 = vld [vmem:[#allocation2 + $0x8] sm:$0xff]
    %v88 = vld [vmem:[#allocation2 + $0x10] sm:$0xff]
    %v89 = vld [vmem:[#allocation2 + $0x18] sm:$0xff]
    %v90 = vld [vmem:[#allocation2 + $0x20] sm:$0xff]
    %v91 = vld [vmem:[#allocation2 + $0x28] sm:$0xff]
    %v92 = vld [vmem:[#allocation2 + $0x30] sm:$0xff]
    %v93 = vld [vmem:[#allocation2 + $0x38] sm:$0xff]
    %v94 = vld [vmem:[#allocation2 + $0x40] sm:$0xff]
    %v95 = vld [vmem:[#allocation2 + $0x48] sm:$0xff]
    %v96 = vld [vmem:[#allocation2 + $0x50] sm:$0xff]
    %v97 = vld [vmem:[#allocation2 + $0x58] sm:$0xff]
    %v98 = vld [vmem:[#allocation2 + $0x60] sm:$0xff]
    %v99 = vld [vmem:[#allocation2 + $0x68] sm:$0xff]
    %v100 = vld [vmem:[#allocation2 + $0x70] sm:$0xff]
    %v101 = vld [vmem:[#allocation2 + $0x78] sm:$0xff]
    %v102 = vunpack.c.l.bf16 %v86
    %v103 = vunpack.c.l.bf16 %v87
    %v104 = vunpack.c.l.bf16 %v88
    %v105 = vunpack.c.l.bf16 %v89
    %v106 = vunpack.c.l.bf16 %v90
    %v107 = vunpack.c.l.bf16 %v91
    %v108 = vunpack.c.l.bf16 %v92
    %v109 = vunpack.c.l.bf16 %v93
    %v110 = vunpack.c.l.bf16 %v94
    %v111 = vunpack.c.l.bf16 %v95
    %v112 = vunpack.c.l.bf16 %v96
    %v113 = vunpack.c.l.bf16 %v97
    %v114 = vunpack.c.l.bf16 %v98
    %v115 = vunpack.c.l.bf16 %v99
    %v116 = vunpack.c.l.bf16 %v100
    %v117 = vunpack.c.l.bf16 %v101
    %v118 = vld [vmem:[%s1] sm:$0x1]
    %v119 = vmul.f32 %v102, %v102
    %v120 = vmul.f32 %v103, %v103
    %v121 = vmul.f32 %v104, %v104
    %v122 = vmul.f32 %v105, %v105
    %v123 = vmul.f32 %v106, %v106
    %v124 = vmul.f32 %v107, %v107
    %v125 = vmul.f32 %v108, %v108
    %v126 = vmul.f32 %v109, %v109
    %v127 = vmul.f32 %v110, %v110
    %v128 = vmul.f32 %v111, %v111
    %v129 = vmul.f32 %v112, %v112
    %v130 = vmul.f32 %v113, %v113
    %v131 = vmul.f32 %v114, %v114
    %v132 = vmul.f32 %v115, %v115
    %v133 = vmul.f32 %v116, %v116
    %v134 = vmul.f32 %v117, %v117
    %135 = vadd.xlane.f32.xlu0 %v119
    %v136 = vpop.xlane.xlu0 %135
    %137 = vadd.xlane.f32.xlu0 %v120
    %v138 = vpop.xlane.xlu0 %137
    %139 = vadd.xlane.f32.xlu0 %v121
    %v140 = vpop.xlane.xlu0 %139
    %141 = vadd.xlane.f32.xlu0 %v122
    %v142 = vpop.xlane.xlu0 %141
    %143 = vadd.xlane.f32.xlu0 %v123
    %v144 = vpop.xlane.xlu0 %143
    %145 = vadd.xlane.f32.xlu0 %v124
    %v146 = vpop.xlane.xlu0 %145
    %147 = vadd.xlane.f32.xlu0 %v125
    %v148 = vpop.xlane.xlu0 %147
    %149 = vadd.xlane.f32.xlu0 %v126
    %v150 = vpop.xlane.xlu0 %149
    %151 = vadd.xlane.f32.xlu0 %v127
    %v152 = vpop.xlane.xlu0 %151
    %153 = vadd.xlane.f32.xlu0 %v128
    %v154 = vpop.xlane.xlu0 %153
    %155 = vadd.xlane.f32.xlu0 %v129
    %v156 = vpop.xlane.xlu0 %155
    %157 = vadd.xlane.f32.xlu0 %v130
    %v158 = vpop.xlane.xlu0 %157
    %159 = vadd.xlane.f32.xlu0 %v131
    %v160 = vpop.xlane.xlu0 %159
    %161 = vadd.xlane.f32.xlu0 %v132
    %v162 = vpop.xlane.xlu0 %161
    %163 = vadd.xlane.f32.xlu0 %v133
    %v164 = vpop.xlane.xlu0 %163
    %165 = vadd.xlane.f32.xlu0 %v134
    %v166 = vpop.xlane.xlu0 %165
    %v167 = vadd.f32 %v136, 1e-12
    %v168 = vadd.f32 %v138, 1e-12
    %v169 = vadd.f32 %v140, 1e-12
    %v170 = vadd.f32 %v142, 1e-12
    %v171 = vadd.f32 %v144, 1e-12
    %v172 = vadd.f32 %v146, 1e-12
    %v173 = vadd.f32 %v148, 1e-12
    %v174 = vadd.f32 %v150, 1e-12
    %v175 = vadd.f32 %v152, 1e-12
    %v176 = vadd.f32 %v154, 1e-12
    %v177 = vadd.f32 %v156, 1e-12
    %v178 = vadd.f32 %v158, 1e-12
    %v179 = vadd.f32 %v160, 1e-12
    %v180 = vadd.f32 %v162, 1e-12
    %v181 = vadd.f32 %v164, 1e-12
    %v182 = vadd.f32 %v166, 1e-12
    %v183 = vrsqrt.pop %v167
    %v184 = vrsqrt.pop %v168
    %v185 = vrsqrt.pop %v169
    %v186 = vrsqrt.pop %v170
    %v187 = vrsqrt.pop %v171
    %v188 = vrsqrt.pop %v172
    %v189 = vrsqrt.pop %v173
    %v190 = vrsqrt.pop %v174
    %v191 = vrsqrt.pop %v175
    %v192 = vrsqrt.pop %v176
    %v193 = vrsqrt.pop %v177
    %v194 = vrsqrt.pop %v178
    %v195 = vrsqrt.pop %v179
    %v196 = vrsqrt.pop %v180
    %v197 = vrsqrt.pop %v181
    %v198 = vrsqrt.pop %v182
    %v200 = vlaneseq
    %v201 = vshrl.u32 %v200, 7
    %v202 = vsub.s32 0, %v201
    %v203 = vrot.slane %v118, %v202
    %v205 = vmul.f32 %v102, %v203
    %v206 = vmul.f32 %v103, %v203
    %v207 = vmul.f32 %v104, %v203
    %v208 = vmul.f32 %v105, %v203
    %v209 = vmul.f32 %v106, %v203
    %v210 = vmul.f32 %v107, %v203
    %v211 = vmul.f32 %v108, %v203
    %v212 = vmul.f32 %v109, %v203
    %v213 = vmul.f32 %v110, %v203
    %v214 = vmul.f32 %v111, %v203
    %v215 = vmul.f32 %v112, %v203
    %v216 = vmul.f32 %v113, %v203
    %v217 = vmul.f32 %v114, %v203
    %v218 = vmul.f32 %v115, %v203
    %v219 = vmul.f32 %v116, %v203
    %v220 = vmul.f32 %v117, %v203
    %221 = vadd.xlane.f32.xlu0 %v205
    %v222 = vpop.xlane.xlu0 %221
    %223 = vadd.xlane.f32.xlu0 %v206
    %v224 = vpop.xlane.xlu0 %223
    %225 = vadd.xlane.f32.xlu0 %v207
    %v226 = vpop.xlane.xlu0 %225
    %227 = vadd.xlane.f32.xlu0 %v208
    %v228 = vpop.xlane.xlu0 %227
    %229 = vadd.xlane.f32.xlu0 %v209
    %v230 = vpop.xlane.xlu0 %229
    %231 = vadd.xlane.f32.xlu0 %v210
    %v232 = vpop.xlane.xlu0 %231
    %233 = vadd.xlane.f32.xlu0 %v211
    %v234 = vpop.xlane.xlu0 %233
    %235 = vadd.xlane.f32.xlu0 %v212
    %v236 = vpop.xlane.xlu0 %235
    %237 = vadd.xlane.f32.xlu0 %v213
    %v238 = vpop.xlane.xlu0 %237
    %239 = vadd.xlane.f32.xlu0 %v214
    %v240 = vpop.xlane.xlu0 %239
    %241 = vadd.xlane.f32.xlu0 %v215
    %v242 = vpop.xlane.xlu0 %241
    %243 = vadd.xlane.f32.xlu0 %v216
    %v244 = vpop.xlane.xlu0 %243
    %245 = vadd.xlane.f32.xlu0 %v217
    %v246 = vpop.xlane.xlu0 %245
    %247 = vadd.xlane.f32.xlu0 %v218
    %v248 = vpop.xlane.xlu0 %247
    %249 = vadd.xlane.f32.xlu0 %v219
    %v250 = vpop.xlane.xlu0 %249
    %251 = vadd.xlane.f32.xlu0 %v220
    %v252 = vpop.xlane.xlu0 %251
    %v253 = vmul.f32 %v222, %v183
    %v254 = vmul.f32 %v224, %v184
    %v255 = vmul.f32 %v226, %v185
    %v256 = vmul.f32 %v228, %v186
    %v257 = vmul.f32 %v230, %v187
    %v258 = vmul.f32 %v232, %v188
    %v259 = vmul.f32 %v234, %v189
    %v260 = vmul.f32 %v236, %v190
    %v261 = vmul.f32 %v238, %v191
    %v262 = vmul.f32 %v240, %v192
    %v263 = vmul.f32 %v242, %v193
    %v264 = vmul.f32 %v244, %v194
    %v265 = vmul.f32 %v246, %v195
    %v266 = vmul.f32 %v248, %v196
    %v267 = vmul.f32 %v250, %v197
    %v268 = vmul.f32 %v252, %v198
    %v269 = vld [vmem:[#allocation5] sm:$0xff]
    %v270 = vld [vmem:[#allocation5 + $0x8] sm:$0xff]
    %v271 = vld [vmem:[#allocation5 + $0x10] sm:$0xff]
    %v272 = vld [vmem:[#allocation5 + $0x18] sm:$0xff]
    %v273 = vld [vmem:[#allocation5 + $0x20] sm:$0xff]
    %v274 = vld [vmem:[#allocation5 + $0x28] sm:$0xff]
    %v275 = vld [vmem:[#allocation5 + $0x30] sm:$0xff]
    %v276 = vld [vmem:[#allocation5 + $0x38] sm:$0xff]
    %v277 = vld [vmem:[#allocation5 + $0x40] sm:$0xff]
    %v278 = vld [vmem:[#allocation5 + $0x48] sm:$0xff]
    %v279 = vld [vmem:[#allocation5 + $0x50] sm:$0xff]
    %v280 = vld [vmem:[#allocation5 + $0x58] sm:$0xff]
    %v281 = vld [vmem:[#allocation5 + $0x60] sm:$0xff]
    %v282 = vld [vmem:[#allocation5 + $0x68] sm:$0xff]
    %v283 = vld [vmem:[#allocation5 + $0x70] sm:$0xff]
    %v284 = vld [vmem:[#allocation5 + $0x78] sm:$0xff]
    %v285 = vld [vmem:[#allocation5 + $0x80] sm:$0xff]
    %v286 = vld [vmem:[#allocation5 + $0x88] sm:$0xff]
    %v287 = vld [vmem:[#allocation5 + $0x90] sm:$0xff]
    %v288 = vld [vmem:[#allocation5 + $0x98] sm:$0xff]
    %v289 = vld [vmem:[#allocation5 + $0xa0] sm:$0xff]
    %v290 = vld [vmem:[#allocation5 + $0xa8] sm:$0xff]
    %v291 = vld [vmem:[#allocation5 + $0xb0] sm:$0xff]
    %v292 = vld [vmem:[#allocation5 + $0xb8] sm:$0xff]
    %v293 = vld [vmem:[#allocation5 + $0xc0] sm:$0xff]
    %v294 = vld [vmem:[#allocation5 + $0xc8] sm:$0xff]
    %v295 = vld [vmem:[#allocation5 + $0xd0] sm:$0xff]
    %v296 = vld [vmem:[#allocation5 + $0xd8] sm:$0xff]
    %v297 = vld [vmem:[#allocation5 + $0xe0] sm:$0xff]
    %v298 = vld [vmem:[#allocation5 + $0xe8] sm:$0xff]
    %v299 = vld [vmem:[#allocation5 + $0xf0] sm:$0xff]
    %v300 = vld [vmem:[#allocation5 + $0xf8] sm:$0xff]
    %v317 = vunpack.c.l.b16 %v86
    %v318 = vunpack.c.h.b16 %v86
    %v319 = vunpack.c.l.b16 %v87
    %v320 = vunpack.c.h.b16 %v87
    %v321 = vunpack.c.l.b16 %v88
    %v322 = vunpack.c.h.b16 %v88
    %v323 = vunpack.c.l.b16 %v89
    %v324 = vunpack.c.h.b16 %v89
    %v325 = vunpack.c.l.b16 %v90
    %v326 = vunpack.c.h.b16 %v90
    %v327 = vunpack.c.l.b16 %v91
    %v328 = vunpack.c.h.b16 %v91
    %v329 = vunpack.c.l.b16 %v92
    %v330 = vunpack.c.h.b16 %v92
    %v331 = vunpack.c.l.b16 %v93
    %v332 = vunpack.c.h.b16 %v93
    %v333 = vunpack.c.l.b16 %v94
    %v334 = vunpack.c.h.b16 %v94
    %v335 = vunpack.c.l.b16 %v95
    %v336 = vunpack.c.h.b16 %v95
    %v337 = vunpack.c.l.b16 %v96
    %v338 = vunpack.c.h.b16 %v96
    %v339 = vunpack.c.l.b16 %v97
    %v340 = vunpack.c.h.b16 %v97
    %v341 = vunpack.c.l.b16 %v98
    %v342 = vunpack.c.h.b16 %v98
    %v343 = vunpack.c.l.b16 %v99
    %v344 = vunpack.c.h.b16 %v99
    %v345 = vunpack.c.l.b16 %v100
    %v346 = vunpack.c.h.b16 %v100
    %v347 = vunpack.c.l.b16 %v101
    %v348 = vunpack.c.h.b16 %v101
    %v349 = vpack.c.b16 %v319, %v317
    %v350 = vpack.c.b16 %v320, %v318
    %v351 = vpack.c.b16 %v323, %v321
    %v352 = vpack.c.b16 %v324, %v322
    %v353 = vpack.c.b16 %v327, %v325
    %v354 = vpack.c.b16 %v328, %v326
    %v355 = vpack.c.b16 %v331, %v329
    %v356 = vpack.c.b16 %v332, %v330
    %v357 = vpack.c.b16 %v335, %v333
    %v358 = vpack.c.b16 %v336, %v334
    %v359 = vpack.c.b16 %v339, %v337
    %v360 = vpack.c.b16 %v340, %v338
    %v361 = vpack.c.b16 %v343, %v341
    %v362 = vpack.c.b16 %v344, %v342
    %v363 = vpack.c.b16 %v347, %v345
    %v364 = vpack.c.b16 %v348, %v346
    %v413 = vunpack.c.l.b16 %v269
    %v414 = vunpack.c.h.b16 %v269
    %v415 = vunpack.c.l.b16 %v270
    %v416 = vunpack.c.h.b16 %v270
    %v417 = vunpack.c.l.b16 %v271
    %v418 = vunpack.c.h.b16 %v271
    %v419 = vunpack.c.l.b16 %v272
    %v420 = vunpack.c.h.b16 %v272
    %v421 = vunpack.c.l.b16 %v273
    %v422 = vunpack.c.h.b16 %v273
    %v423 = vunpack.c.l.b16 %v274
    %v424 = vunpack.c.h.b16 %v274
    %v425 = vunpack.c.l.b16 %v275
    %v426 = vunpack.c.h.b16 %v275
    %v427 = vunpack.c.l.b16 %v276
    %v428 = vunpack.c.h.b16 %v276
    %v429 = vunpack.c.l.b16 %v277
    %v430 = vunpack.c.h.b16 %v277
    %v431 = vunpack.c.l.b16 %v278
    %v432 = vunpack.c.h.b16 %v278
    %v433 = vunpack.c.l.b16 %v279
    %v434 = vunpack.c.h.b16 %v279
    %v435 = vunpack.c.l.b16 %v280
    %v436 = vunpack.c.h.b16 %v280
    %v437 = vunpack.c.l.b16 %v281
    %v438 = vunpack.c.h.b16 %v281
    %v439 = vunpack.c.l.b16 %v282
    %v440 = vunpack.c.h.b16 %v282
    %v441 = vunpack.c.l.b16 %v283
    %v442 = vunpack.c.h.b16 %v283
    %v443 = vunpack.c.l.b16 %v284
    %v444 = vunpack.c.h.b16 %v284
    %v445 = vunpack.c.l.b16 %v285
    %v446 = vunpack.c.h.b16 %v285
    %v447 = vunpack.c.l.b16 %v286
    %v448 = vunpack.c.h.b16 %v286
    %v449 = vunpack.c.l.b16 %v287
    %v450 = vunpack.c.h.b16 %v287
    %v451 = vunpack.c.l.b16 %v288
    %v452 = vunpack.c.h.b16 %v288
    %v453 = vunpack.c.l.b16 %v289
    %v454 = vunpack.c.h.b16 %v289
    %v455 = vunpack.c.l.b16 %v290
    %v456 = vunpack.c.h.b16 %v290
    %v457 = vunpack.c.l.b16 %v291
    %v458 = vunpack.c.h.b16 %v291
    %v459 = vunpack.c.l.b16 %v292
    %v460 = vunpack.c.h.b16 %v292
    %v461 = vunpack.c.l.b16 %v293
    %v462 = vunpack.c.h.b16 %v293
    %v463 = vunpack.c.l.b16 %v294
    %v464 = vunpack.c.h.b16 %v294
    %v465 = vunpack.c.l.b16 %v295
    %v466 = vunpack.c.h.b16 %v295
    %v467 = vunpack.c.l.b16 %v296
    %v468 = vunpack.c.h.b16 %v296
    %v469 = vunpack.c.l.b16 %v297
    %v470 = vunpack.c.h.b16 %v297
    %v471 = vunpack.c.l.b16 %v298
    %v472 = vunpack.c.h.b16 %v298
    %v473 = vunpack.c.l.b16 %v299
    %v474 = vunpack.c.h.b16 %v299
    %v475 = vunpack.c.l.b16 %v300
    %v476 = vunpack.c.h.b16 %v300
    %v477 = vpack.c.b16 %v415, %v413
    %v478 = vpack.c.b16 %v416, %v414
    %v479 = vpack.c.b16 %v419, %v417
    %v480 = vpack.c.b16 %v420, %v418
    %v481 = vpack.c.b16 %v423, %v421
    %v482 = vpack.c.b16 %v424, %v422
    %v483 = vpack.c.b16 %v427, %v425
    %v484 = vpack.c.b16 %v428, %v426
    %v485 = vpack.c.b16 %v431, %v429
    %v486 = vpack.c.b16 %v432, %v430
    %v487 = vpack.c.b16 %v435, %v433
    %v488 = vpack.c.b16 %v436, %v434
    %v489 = vpack.c.b16 %v439, %v437
    %v490 = vpack.c.b16 %v440, %v438
    %v491 = vpack.c.b16 %v443, %v441
    %v492 = vpack.c.b16 %v444, %v442
    %v493 = vpack.c.b16 %v447, %v445
    %v494 = vpack.c.b16 %v448, %v446
    %v495 = vpack.c.b16 %v451, %v449
    %v496 = vpack.c.b16 %v452, %v450
    %v497 = vpack.c.b16 %v455, %v453
    %v498 = vpack.c.b16 %v456, %v454
    %v499 = vpack.c.b16 %v459, %v457
    %v500 = vpack.c.b16 %v460, %v458
    %v501 = vpack.c.b16 %v463, %v461
    %v502 = vpack.c.b16 %v464, %v462
    %v503 = vpack.c.b16 %v467, %v465
    %v504 = vpack.c.b16 %v468, %v466
    %v505 = vpack.c.b16 %v471, %v469
    %v506 = vpack.c.b16 %v472, %v470
    %v507 = vpack.c.b16 %v475, %v473
    %v508 = vpack.c.b16 %v476, %v474
    %541 = vmatprep.subr.bf16.mxu0 %v478
    %542 = vmatpush1.bf16.msra.mxu0 %v477
    %543 = vmatprep.subr.bf16.mxu0 %v480
    %544 = vmatpush1.bf16.msra.mxu0 %v479
    %545 = vmatprep.subr.bf16.mxu0 %v482
    %546 = vmatpush1.bf16.msra.mxu0 %v481
    %547 = vmatprep.subr.bf16.mxu0 %v484
    %548 = vmatpush1.bf16.msra.mxu0 %v483
    %549 = vmatprep.subr.bf16.mxu0 %v486
    %550 = vmatpush1.bf16.msra.mxu0 %v485
    %551 = vmatprep.subr.bf16.mxu0 %v488
    %552 = vmatpush1.bf16.msra.mxu0 %v487
    %553 = vmatprep.subr.bf16.mxu0 %v490
    %554 = vmatpush1.bf16.msra.mxu0 %v489
    %555 = vmatprep.subr.bf16.mxu0 %v492
    %556 = vmatpush1.bf16.msra.mxu0 %v491
    %557 = vmatprep.subr.bf16.mxu0 %v494
    %558 = vmatpush1.bf16.msra.mxu0 %v493
    %559 = vmatprep.subr.bf16.mxu0 %v496
    %560 = vmatpush1.bf16.msra.mxu0 %v495
    %561 = vmatprep.subr.bf16.mxu0 %v498
    %562 = vmatpush1.bf16.msra.mxu0 %v497
    %563 = vmatprep.subr.bf16.mxu0 %v500
    %564 = vmatpush1.bf16.msra.mxu0 %v499
    %565 = vmatprep.subr.bf16.mxu0 %v502
    %566 = vmatpush1.bf16.msra.mxu0 %v501
    %567 = vmatprep.subr.bf16.mxu0 %v504
    %568 = vmatpush1.bf16.msra.mxu0 %v503
    %569 = vmatprep.subr.bf16.mxu0 %v506
    %570 = vmatpush1.bf16.msra.mxu0 %v505
    %571 = vmatprep.subr.bf16.mxu0 %v508
    %572 = vmatpush1.bf16.msra.mxu0 %v507
    %573 = vmatprep.mubr.bf16.mxu0 %v350
    %574 = vmatmul.mubr.bf16.gmra.mrb[0].mxu0 %v349
    %v575 = vpop.f32.mrb[0].mxu0
    %v576 = vadd.f32 0.0, %v575
    %v577 = vpop.f32.mrb[0].mxu0
    %v578 = vadd.f32 0.0, %v577
    %v579 = vpop.f32.mrb[0].mxu0
    %v580 = vadd.f32 0.0, %v579
    %v581 = vpop.f32.mrb[0].mxu0
    %v582 = vadd.f32 0.0, %v581
    %583 = vmatprep.mubr.bf16.mxu0 %v352
    %584 = vmatmul.mubr.bf16.gmra.mrb[0].mxu0 %v351
    %v585 = vpop.f32.mrb[0].mxu0
    %v586 = vadd.f32 0.0, %v585
    %v587 = vpop.f32.mrb[0].mxu0
    %v588 = vadd.f32 0.0, %v587
    %v589 = vpop.f32.mrb[0].mxu0
    %v590 = vadd.f32 0.0, %v589
    %v591 = vpop.f32.mrb[0].mxu0
    %v592 = vadd.f32 0.0, %v591
    %593 = vmatprep.mubr.bf16.mxu0 %v354
    %594 = vmatmul.mubr.bf16.gmra.mrb[0].mxu0 %v353
    %v595 = vpop.f32.mrb[0].mxu0
    %v596 = vadd.f32 0.0, %v595
    %v597 = vpop.f32.mrb[0].mxu0
    %v598 = vadd.f32 0.0, %v597
    %v599 = vpop.f32.mrb[0].mxu0
    %v600 = vadd.f32 0.0, %v599
    %v601 = vpop.f32.mrb[0].mxu0
    %v602 = vadd.f32 0.0, %v601
    %603 = vmatprep.mubr.bf16.mxu0 %v356
    %604 = vmatmul.mubr.bf16.gmra.mrb[0].mxu0 %v355
    %v605 = vpop.f32.mrb[0].mxu0
    %v606 = vadd.f32 0.0, %v605
    %v607 = vpop.f32.mrb[0].mxu0
    %v608 = vadd.f32 0.0, %v607
    %v609 = vpop.f32.mrb[0].mxu0
    %v610 = vadd.f32 0.0, %v609
    %v611 = vpop.f32.mrb[0].mxu0
    %v612 = vadd.f32 0.0, %v611
    %613 = vmatprep.mubr.bf16.mxu0 %v358
    %614 = vmatmul.mubr.bf16.gmra.mrb[0].mxu0 %v357
    %v615 = vpop.f32.mrb[0].mxu0
    %v616 = vadd.f32 0.0, %v615
    %v617 = vpop.f32.mrb[0].mxu0
    %v618 = vadd.f32 0.0, %v617
    %v619 = vpop.f32.mrb[0].mxu0
    %v620 = vadd.f32 0.0, %v619
    %v621 = vpop.f32.mrb[0].mxu0
    %v622 = vadd.f32 0.0, %v621
    %623 = vmatprep.mubr.bf16.mxu0 %v360
    %624 = vmatmul.mubr.bf16.gmra.mrb[0].mxu0 %v359
    %v625 = vpop.f32.mrb[0].mxu0
    %v626 = vadd.f32 0.0, %v625
    %v627 = vpop.f32.mrb[0].mxu0
    %v628 = vadd.f32 0.0, %v627
    %v629 = vpop.f32.mrb[0].mxu0
    %v630 = vadd.f32 0.0, %v629
    %v631 = vpop.f32.mrb[0].mxu0
    %v632 = vadd.f32 0.0, %v631
    %633 = vmatprep.mubr.bf16.mxu0 %v362
    %634 = vmatmul.mubr.bf16.gmra.mrb[0].mxu0 %v361
    %v635 = vpop.f32.mrb[0].mxu0
    %v636 = vadd.f32 0.0, %v635
    %v637 = vpop.f32.mrb[0].mxu0
    %v638 = vadd.f32 0.0, %v637
    %v639 = vpop.f32.mrb[0].mxu0
    %v640 = vadd.f32 0.0, %v639
    %v641 = vpop.f32.mrb[0].mxu0
    %v642 = vadd.f32 0.0, %v641
    %643 = vmatprep.mubr.bf16.mxu0 %v364
    %644 = vmatmul.mubr.bf16.gmra.mrb[0].mxu0 %v363
    %v645 = vpop.f32.mrb[0].mxu0
    %v646 = vadd.f32 0.0, %v645
    %v647 = vpop.f32.mrb[0].mxu0
    %v648 = vadd.f32 0.0, %v647
    %v649 = vpop.f32.mrb[0].mxu0
    %v650 = vadd.f32 0.0, %v649
    %v651 = vpop.f32.mrb[0].mxu0
    %v652 = vadd.f32 0.0, %v651
    %653 = vdwg.mxu0
    %v654 = vld [vmem:[%s3] sm:$0x1]
    %v656 = vlaneseq
    %v657 = vshrl.u32 %v656, 7
    %v658 = vsub.s32 0, %v657
    %v659 = vrot.slane %v654, %v658
    %v661 = vadd.f32 %v576, %v659
    %v662 = vadd.f32 %v580, %v659
    %v663 = vadd.f32 %v586, %v659
    %v664 = vadd.f32 %v590, %v659
    %v665 = vadd.f32 %v596, %v659
    %v666 = vadd.f32 %v600, %v659
    %v667 = vadd.f32 %v606, %v659
    %v668 = vadd.f32 %v610, %v659
    %v669 = vadd.f32 %v616, %v659
    %v670 = vadd.f32 %v620, %v659
    %v671 = vadd.f32 %v626, %v659
    %v672 = vadd.f32 %v630, %v659
    %v673 = vadd.f32 %v636, %v659
    %v674 = vadd.f32 %v640, %v659
    %v675 = vadd.f32 %v646, %v659
    %v676 = vadd.f32 %v650, %v659
    %v677 = vmax.f32 %v661, 0.0
    %v678 = vmax.f32 %v662, 0.0
    %v679 = vmax.f32 %v663, 0.0
    %v680 = vmax.f32 %v664, 0.0
    %v681 = vmax.f32 %v665, 0.0
    %v682 = vmax.f32 %v666, 0.0
    %v683 = vmax.f32 %v667, 0.0
    %v684 = vmax.f32 %v668, 0.0
    %v685 = vmax.f32 %v669, 0.0
    %v686 = vmax.f32 %v670, 0.0
    %v687 = vmax.f32 %v671, 0.0
    %v688 = vmax.f32 %v672, 0.0
    %v689 = vmax.f32 %v673, 0.0
    %v690 = vmax.f32 %v674, 0.0
    %v691 = vmax.f32 %v675, 0.0
    %v692 = vmax.f32 %v676, 0.0
    %v693 = vpack.c.bf16 %v678, %v677
    %v694 = vpack.c.bf16 %v680, %v679
    %v695 = vpack.c.bf16 %v682, %v681
    %v696 = vpack.c.bf16 %v684, %v683
    %v697 = vpack.c.bf16 %v686, %v685
    %v698 = vpack.c.bf16 %v688, %v687
    %v699 = vpack.c.bf16 %v690, %v689
    %v700 = vpack.c.bf16 %v692, %v691
    %v701 = vld [vmem:[#allocation7] sm:$0xf]
    %v702 = vld [vmem:[#allocation7 + $0x4] sm:$0xf]
    %v703 = vld [vmem:[#allocation7 + $0x8] sm:$0xf]
    %v704 = vld [vmem:[#allocation7 + $0xc] sm:$0xf]
    %v705 = vld [vmem:[#allocation7 + $0x10] sm:$0xf]
    %v706 = vld [vmem:[#allocation7 + $0x14] sm:$0xf]
    %v707 = vld [vmem:[#allocation7 + $0x18] sm:$0xf]
    %v708 = vld [vmem:[#allocation7 + $0x1c] sm:$0xf]
    %v709 = vld [vmem:[#allocation7 + $0x20] sm:$0xf]
    %v710 = vld [vmem:[#allocation7 + $0x24] sm:$0xf]
    %v711 = vld [vmem:[#allocation7 + $0x28] sm:$0xf]
    %v712 = vld [vmem:[#allocation7 + $0x2c] sm:$0xf]
    %v713 = vld [vmem:[#allocation7 + $0x30] sm:$0xf]
    %v714 = vld [vmem:[#allocation7 + $0x34] sm:$0xf]
    %v715 = vld [vmem:[#allocation7 + $0x38] sm:$0xf]
    %v716 = vld [vmem:[#allocation7 + $0x3c] sm:$0xf]
    %v733 = vunpack.c.l.b16 %v701
    %v734 = vunpack.c.l.b16 %v702
    %v735 = vunpack.c.l.b16 %v703
    %v736 = vunpack.c.l.b16 %v704
    %v737 = vunpack.c.l.b16 %v705
    %v738 = vunpack.c.l.b16 %v706
    %v739 = vunpack.c.l.b16 %v707
    %v740 = vunpack.c.l.b16 %v708
    %v741 = vunpack.c.l.b16 %v709
    %v742 = vunpack.c.l.b16 %v710
    %v743 = vunpack.c.l.b16 %v711
    %v744 = vunpack.c.l.b16 %v712
    %v745 = vunpack.c.l.b16 %v713
    %v746 = vunpack.c.l.b16 %v714
    %v747 = vunpack.c.l.b16 %v715
    %v748 = vunpack.c.l.b16 %v716
    %v749 = vpack.c.b16 %v734, %v733
    %v750 = vpack.c.b16 %v736, %v735
    %v751 = vpack.c.b16 %v738, %v737
    %v752 = vpack.c.b16 %v740, %v739
    %v753 = vpack.c.b16 %v742, %v741
    %v754 = vpack.c.b16 %v744, %v743
    %v755 = vpack.c.b16 %v746, %v745
    %v756 = vpack.c.b16 %v748, %v747
    %765 = vmatprep.subr.bf16.mxu0 0
    %766 = vmatpush1.bf16.msra.mxu0 %v749
    %767 = vmatprep.subr.bf16.mxu0 0
    %768 = vmatpush1.bf16.msra.mxu0 %v750
    %769 = vmatprep.subr.bf16.mxu0 0
    %770 = vmatpush1.bf16.msra.mxu0 %v751
    %771 = vmatprep.subr.bf16.mxu0 0
    %772 = vmatpush1.bf16.msra.mxu0 %v752
    %773 = vmatprep.subr.bf16.mxu0 0
    %774 = vmatpush1.bf16.msra.mxu0 %v753
    %775 = vmatprep.subr.bf16.mxu0 0
    %776 = vmatpush1.bf16.msra.mxu0 %v754
    %777 = vmatprep.subr.bf16.mxu0 0
    %778 = vmatpush1.bf16.msra.mxu0 %v755
    %779 = vmatprep.subr.bf16.mxu0 0
    %780 = vmatpush1.bf16.msra.mxu0 %v756
    %781 = vmatprep.subr.bf16.mxu0 0
    %782 = vmatpush1.bf16.msra.mxu0 0
    %783 = vmatprep.subr.bf16.mxu0 0
    %784 = vmatpush1.bf16.msra.mxu0 0
    %785 = vmatprep.subr.bf16.mxu0 0
    %786 = vmatpush1.bf16.msra.mxu0 0
    %787 = vmatprep.subr.bf16.mxu0 0
    %788 = vmatpush1.bf16.msra.mxu0 0
    %789 = vmatprep.subr.bf16.mxu0 0
    %790 = vmatpush1.bf16.msra.mxu0 0
    %791 = vmatprep.subr.bf16.mxu0 0
    %792 = vmatpush1.bf16.msra.mxu0 0
    %793 = vmatprep.subr.bf16.mxu0 0
    %794 = vmatpush1.bf16.msra.mxu0 0
    %795 = vmatprep.subr.bf16.mxu0 0
    %796 = vmatpush1.bf16.msra.mxu0 0
    %797 = vmatprep.mubr.bf16.mxu0 0
    %798 = vmatmul.mubr.bf16.gmra.mrb[0].mxu0 %v693
    %v799 = vpop.f32.mrb[0].mxu0
    %v800 = vadd.f32 0.0, %v799
    %v801 = vpop.f32.mrb[0].mxu0
    %v802 = vpop.f32.mrb[0].mxu0
    %v803 = vadd.f32 0.0, %v802
    %v804 = vpop.f32.mrb[0].mxu0
    %805 = vmatprep.mubr.bf16.mxu0 0
    %806 = vmatmul.mubr.bf16.gmra.mrb[0].mxu0 %v694
    %v807 = vpop.f32.mrb[0].mxu0
    %v808 = vadd.f32 0.0, %v807
    %v809 = vpop.f32.mrb[0].mxu0
    %v810 = vpop.f32.mrb[0].mxu0
    %v811 = vadd.f32 0.0, %v810
    %v812 = vpop.f32.mrb[0].mxu0
    %813 = vmatprep.mubr.bf16.mxu0 0
    %814 = vmatmul.mubr.bf16.gmra.mrb[0].mxu0 %v695
    %v815 = vpop.f32.mrb[0].mxu0
    %v816 = vadd.f32 0.0, %v815
    %v817 = vpop.f32.mrb[0].mxu0
    %v818 = vpop.f32.mrb[0].mxu0
    %v819 = vadd.f32 0.0, %v818
    %v820 = vpop.f32.mrb[0].mxu0
    %821 = vmatprep.mubr.bf16.mxu0 0
    %822 = vmatmul.mubr.bf16.gmra.mrb[0].mxu0 %v696
    %v823 = vpop.f32.mrb[0].mxu0
    %v824 = vadd.f32 0.0, %v823
    %v825 = vpop.f32.mrb[0].mxu0
    %v826 = vpop.f32.mrb[0].mxu0
    %v827 = vadd.f32 0.0, %v826
    %v828 = vpop.f32.mrb[0].mxu0
    %829 = vmatprep.mubr.bf16.mxu0 0
    %830 = vmatmul.mubr.bf16.gmra.mrb[0].mxu0 %v697
    %v831 = vpop.f32.mrb[0].mxu0
    %v832 = vadd.f32 0.0, %v831
    %v833 = vpop.f32.mrb[0].mxu0
    %v834 = vpop.f32.mrb[0].mxu0
    %v835 = vadd.f32 0.0, %v834
    %v836 = vpop.f32.mrb[0].mxu0
    %837 = vmatprep.mubr.bf16.mxu0 0
    %838 = vmatmul.mubr.bf16.gmra.mrb[0].mxu0 %v698
    %v839 = vpop.f32.mrb[0].mxu0
    %v840 = vadd.f32 0.0, %v839
    %v841 = vpop.f32.mrb[0].mxu0
    %v842 = vpop.f32.mrb[0].mxu0
    %v843 = vadd.f32 0.0, %v842
    %v844 = vpop.f32.mrb[0].mxu0
    %845 = vmatprep.mubr.bf16.mxu0 0
    %846 = vmatmul.mubr.bf16.gmra.mrb[0].mxu0 %v699
    %v847 = vpop.f32.mrb[0].mxu0
    %v848 = vadd.f32 0.0, %v847
    %v849 = vpop.f32.mrb[0].mxu0
    %v850 = vpop.f32.mrb[0].mxu0
    %v851 = vadd.f32 0.0, %v850
    %v852 = vpop.f32.mrb[0].mxu0
    %853 = vmatprep.mubr.bf16.mxu0 0
    %854 = vmatmul.mubr.bf16.gmra.mrb[0].mxu0 %v700
    %v855 = vpop.f32.mrb[0].mxu0
    %v856 = vadd.f32 0.0, %v855
    %v857 = vpop.f32.mrb[0].mxu0
    %v858 = vpop.f32.mrb[0].mxu0
    %v859 = vadd.f32 0.0, %v858
    %v860 = vpop.f32.mrb[0].mxu0
    %861 = vdwg.mxu0
    %v862 = vmul.f32 %v253, %v800
    %v863 = vmul.f32 %v254, %v803
    %v864 = vmul.f32 %v255, %v808
    %v865 = vmul.f32 %v256, %v811
    %v866 = vmul.f32 %v257, %v816
    %v867 = vmul.f32 %v258, %v819
    %v868 = vmul.f32 %v259, %v824
    %v869 = vmul.f32 %v260, %v827
    %v870 = vmul.f32 %v261, %v832
    %v871 = vmul.f32 %v262, %v835
    %v872 = vmul.f32 %v263, %v840
    %v873 = vmul.f32 %v264, %v843
    %v874 = vmul.f32 %v265, %v848
    %v875 = vmul.f32 %v266, %v851
    %v876 = vmul.f32 %v267, %v856
    %v877 = vmul.f32 %v268, %v859
    %v878 = vadd.f32 %v578, %v862
    %v879 = vadd.f32 %v582, %v863
    %v880 = vadd.f32 %v588, %v864
    %v881 = vadd.f32 %v592, %v865
    %v882 = vadd.f32 %v598, %v866
    %v883 = vadd.f32 %v602, %v867
    %v884 = vadd.f32 %v608, %v868
    %v885 = vadd.f32 %v612, %v869
    %v886 = vadd.f32 %v618, %v870
    %v887 = vadd.f32 %v622, %v871
    %v888 = vadd.f32 %v628, %v872
    %v889 = vadd.f32 %v632, %v873
    %v890 = vadd.f32 %v638, %v874
    %v891 = vadd.f32 %v642, %v875
    %v892 = vadd.f32 %v648, %v876
    %v893 = vadd.f32 %v652, %v877
    %v894 = vld [vmem:[%s4] sm:$0x1]
    %v896 = vlaneseq
    %v897 = vshrl.u32 %v896, 7
    %v898 = vsub.s32 0, %v897
    %v899 = vrot.slane %v894, %v898
    %v901 = vadd.f32 %v878, %v899
    %v902 = vadd.f32 %v879, %v899
    %v903 = vadd.f32 %v880, %v899
    %v904 = vadd.f32 %v881, %v899
    %v905 = vadd.f32 %v882, %v899
    %v906 = vadd.f32 %v883, %v899
    %v907 = vadd.f32 %v884, %v899
    %v908 = vadd.f32 %v885, %v899
    %v909 = vadd.f32 %v886, %v899
    %v910 = vadd.f32 %v887, %v899
    %v911 = vadd.f32 %v888, %v899
    %v912 = vadd.f32 %v889, %v899
    %v913 = vadd.f32 %v890, %v899
    %v914 = vadd.f32 %v891, %v899
    %v915 = vadd.f32 %v892, %v899
    %v916 = vadd.f32 %v893, %v899
    %v917 = vmax.f32 %v901, 0.0
    %v918 = vmax.f32 %v902, 0.0
    %v919 = vmax.f32 %v903, 0.0
    %v920 = vmax.f32 %v904, 0.0
    %v921 = vmax.f32 %v905, 0.0
    %v922 = vmax.f32 %v906, 0.0
    %v923 = vmax.f32 %v907, 0.0
    %v924 = vmax.f32 %v908, 0.0
    %v925 = vmax.f32 %v909, 0.0
    %v926 = vmax.f32 %v910, 0.0
    %v927 = vmax.f32 %v911, 0.0
    %v928 = vmax.f32 %v912, 0.0
    %v929 = vmax.f32 %v913, 0.0
    %v930 = vmax.f32 %v914, 0.0
    %v931 = vmax.f32 %v915, 0.0
    %v932 = vmax.f32 %v916, 0.0
    %v933 = vpack.c.bf16 %v918, %v917
    %v934 = vpack.c.bf16 %v920, %v919
    %v935 = vpack.c.bf16 %v922, %v921
    %v936 = vpack.c.bf16 %v924, %v923
    %v937 = vpack.c.bf16 %v926, %v925
    %v938 = vpack.c.bf16 %v928, %v927
    %v939 = vpack.c.bf16 %v930, %v929
    %v940 = vpack.c.bf16 %v932, %v931
    %v941 = vld [vmem:[#allocation8] sm:$0xf]
    %v942 = vld [vmem:[#allocation8 + $0x4] sm:$0xf]
    %v943 = vld [vmem:[#allocation8 + $0x8] sm:$0xf]
    %v944 = vld [vmem:[#allocation8 + $0xc] sm:$0xf]
    %v945 = vld [vmem:[#allocation8 + $0x10] sm:$0xf]
    %v946 = vld [vmem:[#allocation8 + $0x14] sm:$0xf]
    %v947 = vld [vmem:[#allocation8 + $0x18] sm:$0xf]
    %v948 = vld [vmem:[#allocation8 + $0x1c] sm:$0xf]
    %v949 = vld [vmem:[#allocation8 + $0x20] sm:$0xf]
    %v950 = vld [vmem:[#allocation8 + $0x24] sm:$0xf]
    %v951 = vld [vmem:[#allocation8 + $0x28] sm:$0xf]
    %v952 = vld [vmem:[#allocation8 + $0x2c] sm:$0xf]
    %v953 = vld [vmem:[#allocation8 + $0x30] sm:$0xf]
    %v954 = vld [vmem:[#allocation8 + $0x34] sm:$0xf]
    %v955 = vld [vmem:[#allocation8 + $0x38] sm:$0xf]
    %v956 = vld [vmem:[#allocation8 + $0x3c] sm:$0xf]
    %v957 = vld [vmem:[%s7] sm:$0x1]
    %v959 = vlaneseq
    %v960 = vshrl.u32 %v959, 7
    %v961 = vsub.s32 0, %v960
    %v962 = vrot.slane %v957, %v961
    %v980 = vunpack.c.l.b16 %v941
    %v981 = vunpack.c.l.b16 %v942
    %v982 = vunpack.c.l.b16 %v943
    %v983 = vunpack.c.l.b16 %v944
    %v984 = vunpack.c.l.b16 %v945
    %v985 = vunpack.c.l.b16 %v946
    %v986 = vunpack.c.l.b16 %v947
    %v987 = vunpack.c.l.b16 %v948
    %v988 = vunpack.c.l.b16 %v949
    %v989 = vunpack.c.l.b16 %v950
    %v990 = vunpack.c.l.b16 %v951
    %v991 = vunpack.c.l.b16 %v952
    %v992 = vunpack.c.l.b16 %v953
    %v993 = vunpack.c.l.b16 %v954
    %v994 = vunpack.c.l.b16 %v955
    %v995 = vunpack.c.l.b16 %v956
    %v996 = vpack.c.b16 %v981, %v980
    %v997 = vpack.c.b16 %v983, %v982
    %v998 = vpack.c.b16 %v985, %v984
    %v999 = vpack.c.b16 %v987, %v986
    %v1000 = vpack.c.b16 %v989, %v988
    %v1001 = vpack.c.b16 %v991, %v990
    %v1002 = vpack.c.b16 %v993, %v992
    %v1003 = vpack.c.b16 %v995, %v994
    %1012 = vmatprep.subr.bf16.mxu0 0
    %1013 = vmatpush1.bf16.msra.mxu0 %v996
    %1014 = vmatprep.subr.bf16.mxu0 0
    %1015 = vmatpush1.bf16.msra.mxu0 %v997
    %1016 = vmatprep.subr.bf16.mxu0 0
    %1017 = vmatpush1.bf16.msra.mxu0 %v998
    %1018 = vmatprep.subr.bf16.mxu0 0
    %1019 = vmatpush1.bf16.msra.mxu0 %v999
    %1020 = vmatprep.subr.bf16.mxu0 0
    %1021 = vmatpush1.bf16.msra.mxu0 %v1000
    %1022 = vmatprep.subr.bf16.mxu0 0
    %1023 = vmatpush1.bf16.msra.mxu0 %v1001
    %1024 = vmatprep.subr.bf16.mxu0 0
    %1025 = vmatpush1.bf16.msra.mxu0 %v1002
    %1026 = vmatprep.subr.bf16.mxu0 0
    %1027 = vmatpush1.bf16.msra.mxu0 %v1003
    %1028 = vmatprep.subr.bf16.mxu0 0
    %1029 = vmatpush1.bf16.msra.mxu0 0
    %1030 = vmatprep.subr.bf16.mxu0 0
    %1031 = vmatpush1.bf16.msra.mxu0 0
    %1032 = vmatprep.subr.bf16.mxu0 0
    %1033 = vmatpush1.bf16.msra.mxu0 0
    %1034 = vmatprep.subr.bf16.mxu0 0
    %1035 = vmatpush1.bf16.msra.mxu0 0
    %1036 = vmatprep.subr.bf16.mxu0 0
    %1037 = vmatpush1.bf16.msra.mxu0 0
    %1038 = vmatprep.subr.bf16.mxu0 0
    %1039 = vmatpush1.bf16.msra.mxu0 0
    %1040 = vmatprep.subr.bf16.mxu0 0
    %1041 = vmatpush1.bf16.msra.mxu0 0
    %1042 = vmatprep.subr.bf16.mxu0 0
    %1043 = vmatpush1.bf16.msra.mxu0 0
    %1044 = vmatprep.mubr.bf16.mxu0 0
    %1045 = vmatmul.mubr.bf16.gmra.mrb[0].mxu0 %v933
    %v1046 = vpop.f32.mrb[0].mxu0
    %v1047 = vadd.f32 %v962, %v1046
    %v1048 = vpop.f32.mrb[0].mxu0
    %v1049 = vpop.f32.mrb[0].mxu0
    %v1050 = vadd.f32 %v962, %v1049
    %v1051 = vpop.f32.mrb[0].mxu0
    %1052 = vmatprep.mubr.bf16.mxu0 0
    %1053 = vmatmul.mubr.bf16.gmra.mrb[0].mxu0 %v934
    %v1054 = vpop.f32.mrb[0].mxu0
    %v1055 = vadd.f32 %v962, %v1054
    %v1056 = vpop.f32.mrb[0].mxu0
    %v1057 = vpop.f32.mrb[0].mxu0
    %v1058 = vadd.f32 %v962, %v1057
    %v1059 = vpop.f32.mrb[0].mxu0
    %1060 = vmatprep.mubr.bf16.mxu0 0
    %1061 = vmatmul.mubr.bf16.gmra.mrb[0].mxu0 %v935
    %v1062 = vpop.f32.mrb[0].mxu0
    %v1063 = vadd.f32 %v962, %v1062
    %v1064 = vpop.f32.mrb[0].mxu0
    %v1065 = vpop.f32.mrb[0].mxu0
    %v1066 = vadd.f32 %v962, %v1065
    %v1067 = vpop.f32.mrb[0].mxu0
    %1068 = vmatprep.mubr.bf16.mxu0 0
    %1069 = vmatmul.mubr.bf16.gmra.mrb[0].mxu0 %v936
    %v1070 = vpop.f32.mrb[0].mxu0
    %v1071 = vadd.f32 %v962, %v1070
    %v1072 = vpop.f32.mrb[0].mxu0
    %v1073 = vpop.f32.mrb[0].mxu0
    %v1074 = vadd.f32 %v962, %v1073
    %v1075 = vpop.f32.mrb[0].mxu0
    %1076 = vmatprep.mubr.bf16.mxu0 0
    %1077 = vmatmul.mubr.bf16.gmra.mrb[0].mxu0 %v937
    %v1078 = vpop.f32.mrb[0].mxu0
    %v1079 = vadd.f32 %v962, %v1078
    %v1080 = vpop.f32.mrb[0].mxu0
    %v1081 = vpop.f32.mrb[0].mxu0
    %v1082 = vadd.f32 %v962, %v1081
    %v1083 = vpop.f32.mrb[0].mxu0
    %1084 = vmatprep.mubr.bf16.mxu0 0
    %1085 = vmatmul.mubr.bf16.gmra.mrb[0].mxu0 %v938
    %v1086 = vpop.f32.mrb[0].mxu0
    %v1087 = vadd.f32 %v962, %v1086
    %v1088 = vpop.f32.mrb[0].mxu0
    %v1089 = vpop.f32.mrb[0].mxu0
    %v1090 = vadd.f32 %v962, %v1089
    %v1091 = vpop.f32.mrb[0].mxu0
    %1092 = vmatprep.mubr.bf16.mxu0 0
    %1093 = vmatmul.mubr.bf16.gmra.mrb[0].mxu0 %v939
    %v1094 = vpop.f32.mrb[0].mxu0
    %v1095 = vadd.f32 %v962, %v1094
    %v1096 = vpop.f32.mrb[0].mxu0
    %v1097 = vpop.f32.mrb[0].mxu0
    %v1098 = vadd.f32 %v962, %v1097
    %v1099 = vpop.f32.mrb[0].mxu0
    %1100 = vmatprep.mubr.bf16.mxu0 0
    %1101 = vmatmul.mubr.bf16.gmra.mrb[0].mxu0 %v940
    %v1102 = vpop.f32.mrb[0].mxu0
    %v1103 = vadd.f32 %v962, %v1102
    %v1104 = vpop.f32.mrb[0].mxu0
    %v1105 = vpop.f32.mrb[0].mxu0
    %v1106 = vadd.f32 %v962, %v1105
    %v1107 = vpop.f32.mrb[0].mxu0
    %1108 = vdwg.mxu0
    %v1109 = vmax.f32 %v1047, 0.0
    %v1110 = vmax.f32 %v1050, 0.0
    %v1111 = vmax.f32 %v1055, 0.0
    %v1112 = vmax.f32 %v1058, 0.0
    %v1113 = vmax.f32 %v1063, 0.0
    %v1114 = vmax.f32 %v1066, 0.0
    %v1115 = vmax.f32 %v1071, 0.0
    %v1116 = vmax.f32 %v1074, 0.0
    %v1117 = vmax.f32 %v1079, 0.0
    %v1118 = vmax.f32 %v1082, 0.0
    %v1119 = vmax.f32 %v1087, 0.0
    %v1120 = vmax.f32 %v1090, 0.0
    %v1121 = vmax.f32 %v1095, 0.0
    %v1122 = vmax.f32 %v1098, 0.0
    %v1123 = vmax.f32 %v1103, 0.0
    %v1124 = vmax.f32 %v1106, 0.0
    %1125 = vst [vmem:[#allocation10] sm:$0xff] %v1109
    %1126 = vst [vmem:[#allocation10 + $0x8] sm:$0xff] %v1110
    %1127 = vst [vmem:[#allocation10 + $0x10] sm:$0xff] %v1111
    %1128 = vst [vmem:[#allocation10 + $0x18] sm:$0xff] %v1112
    %1129 = vst [vmem:[#allocation10 + $0x20] sm:$0xff] %v1113
    %1130 = vst [vmem:[#allocation10 + $0x28] sm:$0xff] %v1114
    %1131 = vst [vmem:[#allocation10 + $0x30] sm:$0xff] %v1115
    %1132 = vst [vmem:[#allocation10 + $0x38] sm:$0xff] %v1116
    %1133 = vst [vmem:[#allocation10 + $0x40] sm:$0xff] %v1117
    %1134 = vst [vmem:[#allocation10 + $0x48] sm:$0xff] %v1118
    %1135 = vst [vmem:[#allocation10 + $0x50] sm:$0xff] %v1119
    %1136 = vst [vmem:[#allocation10 + $0x58] sm:$0xff] %v1120
    %1137 = vst [vmem:[#allocation10 + $0x60] sm:$0xff] %v1121
    %1138 = vst [vmem:[#allocation10 + $0x68] sm:$0xff] %v1122
    %1139 = vst [vmem:[#allocation10 + $0x70] sm:$0xff] %v1123
    %1140 = vst [vmem:[#allocation10 + $0x78] sm:$0xff] %v1124
    // Predicated region
    $region50: #{tpu_custom_call.1} parent=1 // pred_check
      _
    $region51: #{tpu_custom_call.1} parent=1 // pred_check_branch
      %1142 = sbr.rel (0) target = $region53
    $region52: #{tpu_custom_call.1} parent=1 // pred_region
      %s1144 = ssub.s32 2048, 2048
      %1145 = vsyncadd [#allocation4], %s1144
      %s1146 = sshll.u32 [#allocation10], 4
      %s1147 = int_to_ptr.vmem [resolvable:$true] %s1146
      %1152 = dma.vmem_to_hbm [thread:$0]  %s1147, 2048, %s8, [#allocation4], 128, 128, 8
    $region53: #{tpu_custom_call.1} parent=1 // pred_fallthru
      _
    // Predicated region
    $region54: #{tpu_custom_call.1} parent=1 // pred_check
      _
    $region55: #{tpu_custom_call.1} parent=1 // pred_check_branch
      %1154 = sbr.rel (0) target = $region57
    $region56: #{tpu_custom_call.1} parent=1 // pred_region
      %1155 = dma.done [#allocation4], 2048
    $region57: #{tpu_custom_call.1} parent=1 // pred_fallthru
      _
    %1156 = vsyncpa [#allocation3], 1
    %1157 = vsyncpa [#allocation6], 1
    %1158 = vsyncpa [#allocation9], 1
    %1159 = vsyncpa [#allocation4], 1

</llo_original>
